<compile_context>
chip_gen: v5e
topology: v5e:2x2
jax: 0.10.0
libtpu: 0.0.40
codegen_flags: <defaults>
</compile_context>

<pallas_src>
import functools

import jax
import jax.numpy as jnp
from jax.experimental import pallas as pl
from jax.experimental.pallas import tpu as pltpu

_LANE = 512        # lane width: multiple of 128 -> dense, unmasked vst
_ROW_ALIGN = 32    # sublane alignment covering f32/bf16/fp8/int8 packing
_TILE_ROWS = 2048  # rows per grid step: 2048 x 512 f32 tile = 4 MiB


def _relu_kernel(x_ref, o_ref):
    # Elementwise ReLU on the whole VMEM tile (pure VPU work, hidden under
    # the HBM<->VMEM DMAs that Pallas double-buffers for us).
    o_ref[...] = jnp.maximum(x_ref[...], jnp.zeros((), dtype=x_ref.dtype))


@functools.partial(jax.jit, static_argnames=())
def ocean_forward(x: jax.Array) -> jax.Array:
    """Equivalent of Ocean.forward: output = ReLU(input). Any shape/dtype."""
    orig_shape = x.shape
    n = x.size

    # Flatten and zero-pad so the slab is (rows, _LANE) with rows % 32 == 0.
    chunk = _LANE * _ROW_ALIGN
    padded_n = ((n + chunk - 1) // chunk) * chunk
    flat = x.reshape(-1)
    if padded_n != n:
        flat = jnp.pad(flat, (0, padded_n - n))
    rows = padded_n // _LANE
    x2d = flat.reshape(rows, _LANE)

    # Tile over rows; for small inputs the tile degenerates to the full slab.
    tile_rows = min(_TILE_ROWS, rows)  # both are multiples of 32 -> aligned
    grid = (pl.cdiv(rows, tile_rows),)

    out2d = pl.pallas_call(
        _relu_kernel,
        out_shape=jax.ShapeDtypeStruct((rows, _LANE), x.dtype),
        grid=grid,
        in_specs=[pl.BlockSpec((tile_rows, _LANE), lambda i: (i, 0))],
        out_specs=pl.BlockSpec((tile_rows, _LANE), lambda i: (i, 0)),
        compiler_params=pltpu.CompilerParams(
            # parallel -> Mosaic may shard the row-tile loop across the two
            # TensorCores on v7x; harmless no-op on v5e/v6e.
            dimension_semantics=("parallel",),
            # Raise scoped-VMEM so the 16 MiB of double-buffered tiles fit on
            # v5e (default 16 MiB) as well as v6e/v7x.
            vmem_limit_bytes=64 * 1024 * 1024,
        ),
    )(x2d)
    # TODO(synk): when this ReLU follows a matmul/conv in the real model, fuse
    # it into that kernel's epilogue instead of a standalone pallas_call.

    out_flat = out2d.reshape(-1)
    if padded_n != n:
        out_flat = out_flat[:n]
    return out_flat.reshape(orig_shape)


if __name__ == "__main__":
    key = jax.random.PRNGKey(0)

    # Mirror the reference script: input reshaped to (-1, 1, 2, 2), NCHW.
    raw = jax.random.normal(key, (8,), dtype=jnp.float32) * 3.0
    x = raw.reshape(-1, 1, 2, 2)  # (2, 1, 2, 2)

    out = jax.block_until_ready(ocean_forward(x))
    ref = jnp.maximum(x, 0.0)
    assert out.shape == x.shape
    assert jnp.allclose(out, ref), "ReLU kernel mismatch (small input)"

    # Second check with a more realistic activation shape.
    key2 = jax.random.PRNGKey(1)
    x2 = jax.random.normal(key2, (2, 4, 16, 16), dtype=jnp.float32) * 2.0
    out2 = jax.block_until_ready(ocean_forward(x2))
    ref2 = jnp.maximum(x2, 0.0)
    assert out2.shape == x2.shape
    assert jnp.allclose(out2, ref2), "ReLU kernel mismatch (NCHW input)"

    # Third check: bf16 path (sublane packing) + size that exercises the grid.
    key3 = jax.random.PRNGKey(2)
    x3 = jax.random.normal(key3, (3, 7, 33, 65), dtype=jnp.bfloat16)
    out3 = jax.block_until_ready(ocean_forward(x3))
    ref3 = jnp.maximum(x3, jnp.bfloat16(0))
    assert out3.shape == x3.shape
    assert jnp.array_equal(out3, ref3), "ReLU kernel mismatch (bf16 input)"

    print("KERNEL_OK")
</pallas_src>

<mosaic_0001>
module attributes {stable_mosaic.version = 11 : i64} {
  func.func @_relu_kernel(%arg0: i32, %arg1: memref<32x512xf32, #tpu.memory_space<vmem>>, %arg2: memref<32x512xf32, #tpu.memory_space<vmem>>) attributes {dimension_semantics = [#tpu.dimension_semantics<parallel>], iteration_bounds = array<i64: 1>, scalar_prefetch = 0 : i64, scratch_operands = 0 : i64, tpu.core_type = #tpu.core_type<tc>, window_params = [{transform_indices = @transform_0, window_bounds = array<i64: 32, 512>}, {transform_indices = @transform_1, window_bounds = array<i64: 32, 512>}]} {
    %c0 = arith.constant 0 : index
    %c0_0 = arith.constant 0 : index
    %0 = vector.load %arg1[%c0, %c0_0] : memref<32x512xf32, #tpu.memory_space<vmem>>, vector<32x512xf32>
    %cst = arith.constant 0.000000e+00 : f32
    %1 = vector.broadcast %cst : f32 to vector<32x512xf32>
    %2 = arith.maximumf %0, %1 : vector<32x512xf32>
    %c0_1 = arith.constant 0 : index
    %c0_2 = arith.constant 0 : index
    %3 = vector.load %arg2[%c0_1, %c0_2] : memref<32x512xf32, #tpu.memory_space<vmem>>, vector<32x512xf32>
    tpu.vector_store %arg2[%c0_1, %c0_2], %2 {strides = array<i32>} : memref<32x512xf32, #tpu.memory_space<vmem>>, vector<32x512xf32>,
    return
  }
  func.func @transform_0(%arg0: i32) -> (i32, i32) {
    %c0_i32 = arith.constant 0 : i32
    %c0_i32_0 = arith.constant 0 : i32
    return %arg0, %c0_i32 : i32, i32
  }
  func.func @transform_1(%arg0: i32) -> (i32, i32) {
    %c0_i32 = arith.constant 0 : i32
    %c0_i32_0 = arith.constant 0 : i32
    return %arg0, %c0_i32 : i32, i32
  }
}

</mosaic_0001>

<llo_original>
// kernel: ocean_forward.1
$region0: #{ocean_forward.1}
  #allocation0 [shape = 'u32[]', space=smem, size = 0x4, offset = 0x4, fixed_abs, tag = 'smem constant byte address 0x4 - core index']
  #allocation1 [shape = 'u32[72,128]{1,0:T(1,128)}', space=vmem, size = 0x9000, scoped, tag = 'internal scratch']
  %s0 = inlined_call_operand.vmem [shape: f32[32,512], index: 0, kind: input, shape index: {}]
  %s1 = inlined_call_operand.vmem [shape: f32[32,512], index: 1, kind: output, shape index: {}]
  %s2 = sld [smem:[#allocation0]]
  $region14: #{ocean_forward.1} parent=0
    _
  %s4 = ssub.s32 1, %s2
  %s5 = scalar_select 0, %s4, %s2
  // Predicated region
  $region2: #{ocean_forward.1} parent=0 // pred_check
    _
  $region3: #{ocean_forward.1} parent=0 // pred_check_branch
    %7 = sbr.rel (0) target = $region5
  $region4: #{ocean_forward.1} parent=0 // pred_region
    _
  $region5: #{ocean_forward.1} parent=0 // pred_fallthru
    _
  %v8 = vld [vmem:[%s0] sm:$0xff]
  %v9 = vld [vmem:[%s0 + $0x8] sm:$0xff]
  %v10 = vld [vmem:[%s0 + $0x10] sm:$0xff]
  %v11 = vld [vmem:[%s0 + $0x18] sm:$0xff]
  %v12 = vld [vmem:[%s0 + $0x20] sm:$0xff]
  %v13 = vld [vmem:[%s0 + $0x28] sm:$0xff]
  %v14 = vld [vmem:[%s0 + $0x30] sm:$0xff]
  %v15 = vld [vmem:[%s0 + $0x38] sm:$0xff]
  %v16 = vld [vmem:[%s0 + $0x40] sm:$0xff]
  %v17 = vld [vmem:[%s0 + $0x48] sm:$0xff]
  %v18 = vld [vmem:[%s0 + $0x50] sm:$0xff]
  %v19 = vld [vmem:[%s0 + $0x58] sm:$0xff]
  %v20 = vld [vmem:[%s0 + $0x60] sm:$0xff]
  %v21 = vld [vmem:[%s0 + $0x68] sm:$0xff]
  %v22 = vld [vmem:[%s0 + $0x70] sm:$0xff]
  %v23 = vld [vmem:[%s0 + $0x78] sm:$0xff]
  %v24 = vmax.f32 %v8, 0.0
  %v25 = vmax.f32 %v9, 0.0
  %v26 = vmax.f32 %v10, 0.0
  %v27 = vmax.f32 %v11, 0.0
  %v28 = vmax.f32 %v12, 0.0
  %v29 = vmax.f32 %v13, 0.0
  %v30 = vmax.f32 %v14, 0.0
  %v31 = vmax.f32 %v15, 0.0
  %v32 = vmax.f32 %v16, 0.0
  %v33 = vmax.f32 %v17, 0.0
  %v34 = vmax.f32 %v18, 0.0
  %v35 = vmax.f32 %v19, 0.0
  %v36 = vmax.f32 %v20, 0.0
  %v37 = vmax.f32 %v21, 0.0
  %v38 = vmax.f32 %v22, 0.0
  %v39 = vmax.f32 %v23, 0.0
  %40 = vst [vmem:[%s1] sm:$0xff] %v24
  %41 = vst [vmem:[%s1 + $0x8] sm:$0xff] %v25
  %42 = vst [vmem:[%s1 + $0x10] sm:$0xff] %v26
  %43 = vst [vmem:[%s1 + $0x18] sm:$0xff] %v27
  %44 = vst [vmem:[%s1 + $0x20] sm:$0xff] %v28
  %45 = vst [vmem:[%s1 + $0x28] sm:$0xff] %v29
  %46 = vst [vmem:[%s1 + $0x30] sm:$0xff] %v30
  %47 = vst [vmem:[%s1 + $0x38] sm:$0xff] %v31
  %48 = vst [vmem:[%s1 + $0x40] sm:$0xff] %v32
  %49 = vst [vmem:[%s1 + $0x48] sm:$0xff] %v33
  %50 = vst [vmem:[%s1 + $0x50] sm:$0xff] %v34
  %51 = vst [vmem:[%s1 + $0x58] sm:$0xff] %v35
  %52 = vst [vmem:[%s1 + $0x60] sm:$0xff] %v36
  %53 = vst [vmem:[%s1 + $0x68] sm:$0xff] %v37
  %54 = vst [vmem:[%s1 + $0x70] sm:$0xff] %v38
  %55 = vst [vmem:[%s1 + $0x78] sm:$0xff] %v39
  // Predicated region
  $region6: #{ocean_forward.1} parent=0 // pred_check
    _
  $region7: #{ocean_forward.1} parent=0 // pred_check_branch
    %57 = sbr.rel (0) target = $region9
  $region8: #{ocean_forward.1} parent=0 // pred_region
    _
  $region9: #{ocean_forward.1} parent=0 // pred_fallthru
    _
  // Predicated region
  $region10: #{ocean_forward.1} parent=0 // pred_check
    _
  $region11: #{ocean_forward.1} parent=0 // pred_check_branch
    %59 = sbr.rel (0) target = $region13
  $region12: #{ocean_forward.1} parent=0 // pred_region
    _
  $region13: #{ocean_forward.1} parent=0 // pred_fallthru
    _

</llo_original>
